<compile_context>
chip_gen: v7x
topology: tpu7x:2x2x1
jax: 0.10.0
libtpu: 0.0.40
codegen_flags: <defaults>
</compile_context>

<pallas_src>
from functools import partial

import jax
import jax.numpy as jnp
from jax.experimental import pallas as pl
from jax.experimental.pallas import tpu as pltpu


def _round_up(n, m):
    return ((n + m - 1) // m) * m


def _default_pack():
    # 4 matches the 256-wide MXU on v6e/v7x; v5e's MXU is 128-wide, where 2 is
    # MXU-optimal (4 would be MXU-neutral there but adds no benefit).
    try:
        kind = jax.devices()[0].device_kind.lower()
        if "v5 lite" in kind or "v5e" in kind or "v5lite" in kind:
            return 2
    except Exception:
        pass
    return 4


def _block_diag(m, k):
    """Replicate (r, c) matrix k times on a block diagonal -> (r*k, c*k)."""
    r, c = m.shape
    out = jnp.zeros((r * k, c * k), m.dtype)
    for j in range(k):
        out = out.at[j * r:(j + 1) * r, j * c:(j + 1) * c].set(m)
    return out


def mlp_kernel(x_ref, w1_ref, b1_ref, w2_ref, b2_ref, w3_ref, b3_ref, o_ref):
    # x tile: (TBp, 12*pack) f32 -> bf16 for the MXU (f32 accumulation).
    xb = x_ref[...].astype(jnp.bfloat16)

    # Folded "embedding+concat+Linear1" + ReLU (bias/ReLU in f32).
    h1 = jnp.maximum(
        jnp.dot(xb, w1_ref[...], preferred_element_type=jnp.float32)
        + b1_ref[...], 0.0)                                        # (TBp, 64*pack)

    # Linear(64,64) + ReLU (block-diagonal packed weights).
    h2 = jnp.maximum(
        jnp.dot(h1.astype(jnp.bfloat16), w2_ref[...],
                preferred_element_type=jnp.float32)
        + b2_ref[...], 0.0)                                        # (TBp, 64*pack)

    # Linear(64,1) on the MXU -> (TBp, pack); b3 is an SMEM scalar.
    y = jnp.dot(h2.astype(jnp.bfloat16), w3_ref[...],
                preferred_element_type=jnp.float32) + b3_ref[0, 0]
    o_ref[...] = y


@partial(jax.jit, static_argnames=("block_rows", "pack"))
def mlp_forward(x, embd, w1, b1, w2, b2, w3, b3, *, block_rows=16384, pack=None):
    """x: (B, 12) float. Returns (B,) f32 (matches .flatten() in PyTorch)."""
    if pack is None:
        pack = _default_pack()
    B, F = x.shape
    assert F == 12, "MLP_source expects 12 input features (6 + 4 + 2)"

    # ---- Fold "embedding @ + concat" into Linear1 (exact algebra in f32) ----
    eaug = jnp.zeros((12, 64), jnp.float32)
    eaug = eaug.at[:6, :58].set(embd.astype(jnp.float32))            # x[:, :6] @ E
    eaug = eaug.at[6:10, 58:62].set(jnp.eye(4, dtype=jnp.float32))   # x[:, 6:10]
    eaug = eaug.at[10:12, 62:64].set(jnp.eye(2, dtype=jnp.float32))  # x[:, -2:]
    w1eff = eaug @ w1.astype(jnp.float32).T                          # (12, 64)

    # ---- k-way row packing: block-diagonal weight replication (tiny, one-off) ----
    w1_bd = _block_diag(w1eff, pack).astype(jnp.bfloat16)                         # (12k, 64k)
    w2_bd = _block_diag(w2.astype(jnp.float32).T, pack).astype(jnp.bfloat16)      # (64k, 64k)
    w3_bd = _block_diag(w3.astype(jnp.float32).reshape(64, 1), pack).astype(jnp.bfloat16)  # (64k, k)
    b1_r = jnp.tile(b1.astype(jnp.float32).reshape(1, 64), (1, pack))             # (1, 64k)
    b2_r = jnp.tile(b2.astype(jnp.float32).reshape(1, 64), (1, pack))             # (1, 64k)
    b3_s = b3.reshape(1, 1).astype(jnp.float32)                                   # SMEM scalar

    # ---- Pack x: pad at most pack-1 rows, then view as (rows_p, 12*pack) ----
    # (row-major reshape; at worst one linear copy — no more bf16 pre-cast or
    #  pad-to-full-tile HBM passes).
    xf = x.astype(jnp.float32)
    if B % pack:
        xf = jnp.pad(xf, ((0, pack - B % pack), (0, 0)))
    rows_p = xf.shape[0] // pack
    xp = xf.reshape(rows_p, 12 * pack)

    # ---- Packed-row tile size ----
    # Big enough to amortize per-grid-step overhead, capped so >=2 tiles exist
    # (both v7x TensorCores get work) and VMEM stays well under limits.
    if rows_p <= 8:
        tbp = rows_p                       # block == full array (tiny-batch path)
    else:
        tbp = max(8, min(block_rows // pack, _round_up(pl.cdiv(rows_p, 2), 8)))
    n_tiles = pl.cdiv(rows_p, tbp)

    flops = 2 * B * (12 * 64 + 64 * 64 + 64)
    bytes_accessed = (B * 12 * 4 + B * 4
                      + 2 * (w1_bd.size + w2_bd.size + w3_bd.size)
                      + 4 * (b1_r.size + b2_r.size + 1))

    out = pl.pallas_call(
        mlp_kernel,
        out_shape=jax.ShapeDtypeStruct((rows_p, pack), jnp.float32),
        grid=(n_tiles,),
        in_specs=[
            pl.BlockSpec((tbp, 12 * pack), lambda i: (i, 0)),          # x: streams
            pl.BlockSpec((12 * pack, 64 * pack), lambda i: (0, 0)),    # W1eff (block-diag)
            pl.BlockSpec((1, 64 * pack), lambda i: (0, 0)),            # b1
            pl.BlockSpec((64 * pack, 64 * pack), lambda i: (0, 0)),    # W2 (block-diag)
            pl.BlockSpec((1, 64 * pack), lambda i: (0, 0)),            # b2
            pl.BlockSpec((64 * pack, pack), lambda i: (0, 0)),         # w3 (block-diag)
            pl.BlockSpec(memory_space=pltpu.MemorySpace.SMEM),         # b3 scalar
        ],
        out_specs=pl.BlockSpec((tbp, pack), lambda i: (i, 0)),
        compiler_params=pltpu.CompilerParams(
            dimension_semantics=("parallel",),
            vmem_limit_bytes=32 * 1024 * 1024,
        ),
        cost_estimate=pl.CostEstimate(
            flops=flops, transcendentals=0, bytes_accessed=bytes_accessed),
    )(xp, w1_bd, b1_r, w2_bd, b2_r, w3_bd, b3_s)

    # (rows_p, pack) row r holds logical rows [pack*r .. pack*r+pack-1] in order.
    return out.reshape(rows_p * pack)[:B]


def reference_forward(x, embd, w1, b1, w2, b2, w3, b3):
    feat = jnp.concatenate([x[:, :6] @ embd, x[:, 6:10], x[:, -2:]], axis=1)
    h1 = jnp.maximum(feat @ w1.T + b1, 0.0)
    h2 = jnp.maximum(h1 @ w2.T + b2, 0.0)
    return (h2 @ w3.T + b3).reshape(-1)


if __name__ == "__main__":
    key = jax.random.PRNGKey(0)
    kx, ke, k1, k2, k3, kb1, kb2, kb3 = jax.random.split(key, 8)

    B = 8
    x = jax.random.normal(kx, (B, 12), dtype=jnp.float32)

    # Parameter shapes follow nn.Embedding(6, 58) and the Linear(64,64/64/1) stack.
    embd = jax.random.normal(ke, (6, 58), dtype=jnp.float32)
    w1 = jax.random.normal(k1, (64, 64), dtype=jnp.float32) * (1.0 / jnp.sqrt(64.0))
    b1 = jax.random.normal(kb1, (64,), dtype=jnp.float32) * 0.01
    w2 = jax.random.normal(k2, (64, 64), dtype=jnp.float32) * (1.0 / jnp.sqrt(64.0))
    b2 = jax.random.normal(kb2, (64,), dtype=jnp.float32) * 0.01
    w3 = jax.random.normal(k3, (1, 64), dtype=jnp.float32) * (1.0 / jnp.sqrt(64.0))
    b3 = jax.random.normal(kb3, (1,), dtype=jnp.float32) * 0.01

    y = mlp_forward(x, embd, w1, b1, w2, b2, w3, b3)
    y = jax.block_until_ready(y)
    assert y.shape == (B,)

    y_ref = reference_forward(x, embd, w1, b1, w2, b2, w3, b3)

    # bf16 MXU operands with f32 accumulation (and the folded W1eff quantized
    # once to bf16) -> tolerance-based check, not bit-exactness.
    max_err = float(jnp.max(jnp.abs(y - y_ref)))
    scale = float(jnp.max(jnp.abs(y_ref)))
    assert max_err <= 0.05 * max(1.0, scale), (max_err, scale, y, y_ref)

    print("KERNEL_OK")
</pallas_src>

<mosaic_0001>
module attributes {stable_mosaic.version = 11 : i64} {
  func.func @mlp_kernel(%arg0: i32, %arg1: memref<2x48xf32, #tpu.memory_space<vmem>>, %arg2: memref<48x256xbf16, #tpu.memory_space<vmem>>, %arg3: memref<1x256xf32, #tpu.memory_space<vmem>>, %arg4: memref<256x256xbf16, #tpu.memory_space<vmem>>, %arg5: memref<1x256xf32, #tpu.memory_space<vmem>>, %arg6: memref<256x4xbf16, #tpu.memory_space<vmem>>, %arg7: memref<1x1xf32, #tpu.memory_space<smem>>, %arg8: memref<2x4xf32, #tpu.memory_space<vmem>>) attributes {dimension_semantics = [#tpu.dimension_semantics<parallel>], iteration_bounds = array<i64: 1>, scalar_prefetch = 0 : i64, scratch_operands = 0 : i64, tpu.core_type = #tpu.core_type<tc>, window_params = [{transform_indices = @transform_0, window_bounds = array<i64: 2, 48>}, {pipeline_mode = #tpu.pipeline_mode<synchronous>, transform_indices = @transform_1, window_bounds = array<i64: 48, 256>}, {pipeline_mode = #tpu.pipeline_mode<synchronous>, transform_indices = @transform_2, window_bounds = array<i64: 1, 256>}, {pipeline_mode = #tpu.pipeline_mode<synchronous>, transform_indices = @transform_3, window_bounds = array<i64: 256, 256>}, {pipeline_mode = #tpu.pipeline_mode<synchronous>, transform_indices = @transform_4, window_bounds = array<i64: 1, 256>}, {pipeline_mode = #tpu.pipeline_mode<synchronous>, transform_indices = @transform_5, window_bounds = array<i64: 256, 4>}, {transform_indices = @transform_6, window_bounds = array<i64: 1, 1>}, {transform_indices = @transform_7, window_bounds = array<i64: 2, 4>}]} {
    %c0 = arith.constant 0 : index
    %c0_0 = arith.constant 0 : index
    %0 = vector.load %arg1[%c0, %c0_0] : memref<2x48xf32, #tpu.memory_space<vmem>>, vector<2x48xf32>
    %1 = arith.truncf %0 : vector<2x48xf32> to vector<2x48xbf16>
    %c0_1 = arith.constant 0 : index
    %c0_2 = arith.constant 0 : index
    %2 = vector.load %arg2[%c0_1, %c0_2] : memref<48x256xbf16, #tpu.memory_space<vmem>>, vector<48x256xbf16>
    %cst = arith.constant dense<0.000000e+00> : vector<2x256xf32>
    %3 = tpu.matmul %1, %2, %cst {dimension_numbers = #tpu.dot_dimension_numbers<[1], [0], [0], [1], [0, 0, 1, 1], [], []>} : vector<2x48xbf16>, vector<48x256xbf16>, vector<2x256xf32> -> vector<2x256xf32>
    %c0_3 = arith.constant 0 : index
    %c0_4 = arith.constant 0 : index
    %4 = vector.load %arg3[%c0_3, %c0_4] : memref<1x256xf32, #tpu.memory_space<vmem>>, vector<1x256xf32>
    %5 = vector.broadcast %4 : vector<1x256xf32> to vector<2x256xf32>
    %6 = arith.addf %3, %5 : vector<2x256xf32>
    %cst_5 = arith.constant 0.000000e+00 : f32
    %7 = vector.broadcast %cst_5 : f32 to vector<2x256xf32>
    %8 = arith.maximumf %6, %7 : vector<2x256xf32>
    %9 = arith.truncf %8 : vector<2x256xf32> to vector<2x256xbf16>
    %c0_6 = arith.constant 0 : index
    %c0_7 = arith.constant 0 : index
    %10 = vector.load %arg4[%c0_6, %c0_7] : memref<256x256xbf16, #tpu.memory_space<vmem>>, vector<256x256xbf16>
    %cst_8 = arith.constant dense<0.000000e+00> : vector<2x256xf32>
    %11 = tpu.matmul %9, %10, %cst_8 {dimension_numbers = #tpu.dot_dimension_numbers<[1], [0], [0], [1], [0, 0, 1, 1], [], []>} : vector<2x256xbf16>, vector<256x256xbf16>, vector<2x256xf32> -> vector<2x256xf32>
    %c0_9 = arith.constant 0 : index
    %c0_10 = arith.constant 0 : index
    %12 = vector.load %arg5[%c0_9, %c0_10] : memref<1x256xf32, #tpu.memory_space<vmem>>, vector<1x256xf32>
    %13 = vector.broadcast %12 : vector<1x256xf32> to vector<2x256xf32>
    %14 = arith.addf %11, %13 : vector<2x256xf32>
    %cst_11 = arith.constant 0.000000e+00 : f32
    %15 = vector.broadcast %cst_11 : f32 to vector<2x256xf32>
    %16 = arith.maximumf %14, %15 : vector<2x256xf32>
    %17 = arith.truncf %16 : vector<2x256xf32> to vector<2x256xbf16>
    %c0_12 = arith.constant 0 : index
    %c0_13 = arith.constant 0 : index
    %18 = vector.load %arg6[%c0_12, %c0_13] : memref<256x4xbf16, #tpu.memory_space<vmem>>, vector<256x4xbf16>
    %cst_14 = arith.constant dense<0.000000e+00> : vector<2x4xf32>
    %19 = tpu.matmul %17, %18, %cst_14 {dimension_numbers = #tpu.dot_dimension_numbers<[1], [0], [0], [1], [0, 0, 1, 1], [], []>} : vector<2x256xbf16>, vector<256x4xbf16>, vector<2x4xf32> -> vector<2x4xf32>
    %c0_15 = arith.constant 0 : index
    %c0_16 = arith.constant 0 : index
    %20 = memref.load %arg7[%c0_15, %c0_16] : memref<1x1xf32, #tpu.memory_space<smem>>
    %21 = vector.broadcast %20 : f32 to vector<2x4xf32>
    %22 = arith.addf %19, %21 : vector<2x4xf32>
    %c0_17 = arith.constant 0 : index
    %c0_18 = arith.constant 0 : index
    %23 = vector.load %arg8[%c0_17, %c0_18] : memref<2x4xf32, #tpu.memory_space<vmem>>, vector<2x4xf32>
    tpu.vector_store %arg8[%c0_17, %c0_18], %22 {strides = array<i32>} : memref<2x4xf32, #tpu.memory_space<vmem>>, vector<2x4xf32>,
    return
  }
  func.func @transform_0(%arg0: i32) -> (i32, i32) {
    %c0_i32 = arith.constant 0 : i32
    %c0_i32_0 = arith.constant 0 : i32
    return %arg0, %c0_i32 : i32, i32
  }
  func.func @transform_1(%arg0: i32) -> (i32, i32) {
    %c0_i32 = arith.constant 0 : i32
    %c0_i32_0 = arith.constant 0 : i32
    %c0_i32_1 = arith.constant 0 : i32
    return %c0_i32, %c0_i32_0 : i32, i32
  }
  func.func @transform_2(%arg0: i32) -> (i32, i32) {
    %c0_i32 = arith.constant 0 : i32
    %c0_i32_0 = arith.constant 0 : i32
    %c0_i32_1 = arith.constant 0 : i32
    return %c0_i32, %c0_i32_0 : i32, i32
  }
  func.func @transform_3(%arg0: i32) -> (i32, i32) {
    %c0_i32 = arith.constant 0 : i32
    %c0_i32_0 = arith.constant 0 : i32
    %c0_i32_1 = arith.constant 0 : i32
    return %c0_i32, %c0_i32_0 : i32, i32
  }
  func.func @transform_4(%arg0: i32) -> (i32, i32) {
    %c0_i32 = arith.constant 0 : i32
    %c0_i32_0 = arith.constant 0 : i32
    %c0_i32_1 = arith.constant 0 : i32
    return %c0_i32, %c0_i32_0 : i32, i32
  }
  func.func @transform_5(%arg0: i32) -> (i32, i32) {
    %c0_i32 = arith.constant 0 : i32
    %c0_i32_0 = arith.constant 0 : i32
    %c0_i32_1 = arith.constant 0 : i32
    return %c0_i32, %c0_i32_0 : i32, i32
  }
  func.func @transform_6(%arg0: i32) -> (i32, i32) {
    %c0_i32 = arith.constant 0 : i32
    %c0_i32_0 = arith.constant 0 : i32
    %c0_i32_1 = arith.constant 0 : i32
    return %c0_i32, %c0_i32_0 : i32, i32
  }
  func.func @transform_7(%arg0: i32) -> (i32, i32) {
    %c0_i32 = arith.constant 0 : i32
    %c0_i32_0 = arith.constant 0 : i32
    return %arg0, %c0_i32 : i32, i32
  }
}

</mosaic_0001>

<llo_original>
// kernel: mlp_forward.1
$region0: #{mlp_forward.1}
  #allocation0 [shape = 'u32[]', space=smem, size = 0x4, offset = 0x4, fixed_abs, tag = 'smem constant byte address 0x4 - core index']
  #allocation1 [shape = 'u32[144,128]{1,0:T(1,128)}', space=vmem, size = 0x12000, scoped, tag = 'internal scratch']
  #allocation2 [shape = 'f32[1,1]{1,0:T(1,128)S(6)}', space=smem, size = 0x200, scoped, tag = 'scoped memory for mlp_forward.1']
  %s0 = inlined_call_operand.vmem [shape: f32[2,48], index: 0, kind: input, shape index: {}]
  %s1 = inlined_call_operand.vmem [shape: bf16[48,256], index: 1, kind: input, shape index: {}]
  %s2 = inlined_call_operand.vmem [shape: f32[1,256], index: 2, kind: input, shape index: {}]
  %s3 = inlined_call_operand.vmem [shape: bf16[256,256], index: 3, kind: input, shape index: {}]
  %s4 = inlined_call_operand.vmem [shape: f32[1,256], index: 4, kind: input, shape index: {}]
  %s5 = inlined_call_operand.vmem [shape: bf16[256,4], index: 5, kind: input, shape index: {}]
  %s6 = inlined_call_operand.<no memory space> [shape: f32[1,1], index: 6, kind: input, shape index: {}]
  %s7 = inlined_call_operand.vmem [shape: f32[2,4], index: 7, kind: output, shape index: {}]
  %s8 = sld [smem:[#allocation0]]
  $region38: #{mlp_forward.1} parent=0
    _
  %s10 = ssub.s32 1, %s8
  %s11 = scalar_select 0, %s10, %s8
  %12 = sst [smem:[#allocation2]] %s6
  // Predicated region
  $region2: #{mlp_forward.1} parent=0 // pred_check
    _
  $region3: #{mlp_forward.1} parent=0 // pred_check_branch
    %14 = sbr.rel (0) target = $region5
  $region4: #{mlp_forward.1} parent=0 // pred_region
    _
  $region5: #{mlp_forward.1} parent=0 // pred_fallthru
    _
  // Predicated region
  $region6: #{mlp_forward.1} parent=0 // pred_check
    _
  $region7: #{mlp_forward.1} parent=0 // pred_check_branch
    %16 = sbr.rel (0) target = $region9
  $region8: #{mlp_forward.1} parent=0 // pred_region
    _
  $region9: #{mlp_forward.1} parent=0 // pred_fallthru
    _
  // Predicated region
  $region10: #{mlp_forward.1} parent=0 // pred_check
    _
  $region11: #{mlp_forward.1} parent=0 // pred_check_branch
    %18 = sbr.rel (0) target = $region13
  $region12: #{mlp_forward.1} parent=0 // pred_region
    _
  $region13: #{mlp_forward.1} parent=0 // pred_fallthru
    _
  // Predicated region
  $region14: #{mlp_forward.1} parent=0 // pred_check
    _
  $region15: #{mlp_forward.1} parent=0 // pred_check_branch
    %20 = sbr.rel (0) target = $region17
  $region16: #{mlp_forward.1} parent=0 // pred_region
    _
  $region17: #{mlp_forward.1} parent=0 // pred_fallthru
    _
  // Predicated region
  $region18: #{mlp_forward.1} parent=0 // pred_check
    _
  $region19: #{mlp_forward.1} parent=0 // pred_check_branch
    %22 = sbr.rel (0) target = $region21
  $region20: #{mlp_forward.1} parent=0 // pred_region
    _
  $region21: #{mlp_forward.1} parent=0 // pred_fallthru
    _
  // Predicated region
  $region22: #{mlp_forward.1} parent=0 // pred_check
    _
  $region23: #{mlp_forward.1} parent=0 // pred_check_branch
    %24 = sbr.rel (0) target = $region25
  $region24: #{mlp_forward.1} parent=0 // pred_region
    _
  $region25: #{mlp_forward.1} parent=0 // pred_fallthru
    _
  // Predicated region
  $region26: #{mlp_forward.1} parent=0 // pred_check
    _
  $region27: #{mlp_forward.1} parent=0 // pred_check_branch
    %26 = sbr.rel (0) target = $region29
  $region28: #{mlp_forward.1} parent=0 // pred_region
    _
  $region29: #{mlp_forward.1} parent=0 // pred_fallthru
    _
  %v28 = vld [vmem:[%s0] sm:$0x3]
  %v29 = vpack.c.bf16 %v28, %v28
  %v30 = vld [vmem:[%s1] sm:$0xff]
  %v31 = vld [vmem:[%s1 + $0x8] sm:$0xff]
  %v32 = vld [vmem:[%s1 + $0x10] sm:$0xff]
  %v33 = vld [vmem:[%s1 + $0x18] sm:$0xff]
  %v34 = vld [vmem:[%s1 + $0x20] sm:$0xff]
  %v35 = vld [vmem:[%s1 + $0x28] sm:$0xff]
  %v36 = vld [vmem:[%s2] sm:$0x3]
  %v38 = vlaneseq
  %v39 = vshrl.u32 %v38, 7
  %v40 = vsub.s32 0, %v39
  %v41 = vrot.slane %v36, %v40
  %v42 = vlaneseq
  %v43 = vshrl.u32 %v42, 7
  %v44 = vsub.s32 1, %v43
  %v45 = vrot.slane %v36, %v44
  %v54 = vunpack.c.l.b16 %v30
  %v55 = vunpack.c.h.b16 %v30
  %v56 = vunpack.c.l.b16 %v31
  %v57 = vunpack.c.h.b16 %v31
  %v58 = vunpack.c.l.b16 %v32
  %v59 = vunpack.c.h.b16 %v32
  %v60 = vunpack.c.l.b16 %v33
  %v61 = vunpack.c.h.b16 %v33
  %v62 = vunpack.c.l.b16 %v34
  %v63 = vunpack.c.h.b16 %v34
  %v64 = vunpack.c.l.b16 %v35
  %v65 = vunpack.c.h.b16 %v35
  %v66 = vpack.c.b16 %v56, %v54
  %v67 = vpack.c.b16 %v57, %v55
  %v68 = vpack.c.b16 %v60, %v58
  %v69 = vpack.c.b16 %v61, %v59
  %v70 = vpack.c.b16 %v64, %v62
  %v71 = vpack.c.b16 %v65, %v63
  %vm78 = vcmask 392192
  %v80 = vsel %vm78, %v29, 0
  %82 = vmatprep.subr.bf16.mxu0 %v67
  %83 = vmatpush1.bf16.msra.mxu0 %v66
  %84 = vmatprep.subr.bf16.mxu0 %v69
  %85 = vmatpush1.bf16.msra.mxu0 %v68
  %86 = vmatprep.subr.bf16.mxu0 %v71
  %87 = vmatpush1.bf16.msra.mxu0 %v70
  %88 = vmatprep.subr.bf16.mxu0 0
  %89 = vmatpush1.bf16.msra.mxu0 0
  %90 = vmatprep.subr.bf16.mxu0 0
  %91 = vmatpush1.bf16.msra.mxu0 0
  %92 = vmatprep.subr.bf16.mxu0 0
  %93 = vmatpush1.bf16.msra.mxu0 0
  %94 = vmatprep.subr.bf16.mxu0 0
  %95 = vmatpush1.bf16.msra.mxu0 0
  %96 = vmatprep.subr.bf16.mxu0 0
  %97 = vmatpush1.bf16.msra.mxu0 0
  %98 = vmatprep.subr.bf16.mxu0 0
  %99 = vmatpush1.bf16.msra.mxu0 0
  %100 = vmatprep.subr.bf16.mxu0 0
  %101 = vmatpush1.bf16.msra.mxu0 0
  %102 = vmatprep.subr.bf16.mxu0 0
  %103 = vmatpush1.bf16.msra.mxu0 0
  %104 = vmatprep.subr.bf16.mxu0 0
  %105 = vmatpush1.bf16.msra.mxu0 0
  %106 = vmatprep.subr.bf16.mxu0 0
  %107 = vmatpush1.bf16.msra.mxu0 0
  %108 = vmatprep.subr.bf16.mxu0 0
  %109 = vmatpush1.bf16.msra.mxu0 0
  %110 = vmatprep.subr.bf16.mxu0 0
  %111 = vmatpush1.bf16.msra.mxu0 0
  %112 = vmatprep.subr.bf16.mxu0 0
  %113 = vmatpush1.bf16.msra.mxu0 0
  %114 = vmatprep.mubr.bf16.mxu0 0
  %115 = vmatmul.mubr.bf16.gmra.mrb[0].mxu0 %v80
  %v116 = vpop.f32.mrb[0].mxu0
  %v117 = vadd.f32 %v41, %v116
  %v118 = vpop.f32.mrb[0].mxu0
  %v119 = vadd.f32 %v45, %v118
  %v120 = vpop.f32.mrb[0].mxu0
  %v121 = vpop.f32.mrb[0].mxu0
  %122 = vdwg.mxu0
  %v123 = vmax.f32 %v117, 0.0
  %v124 = vmax.f32 %v119, 0.0
  %v125 = vpack.c.bf16 %v123, %v123
  %v126 = vpack.c.bf16 %v124, %v124
  %v127 = vld [vmem:[%s3] sm:$0xff]
  %v128 = vld [vmem:[%s3 + $0x8] sm:$0xff]
  %v129 = vld [vmem:[%s3 + $0x10] sm:$0xff]
  %v130 = vld [vmem:[%s3 + $0x18] sm:$0xff]
  %v131 = vld [vmem:[%s3 + $0x20] sm:$0xff]
  %v132 = vld [vmem:[%s3 + $0x28] sm:$0xff]
  %v133 = vld [vmem:[%s3 + $0x30] sm:$0xff]
  %v134 = vld [vmem:[%s3 + $0x38] sm:$0xff]
  %v135 = vld [vmem:[%s3 + $0x40] sm:$0xff]
  %v136 = vld [vmem:[%s3 + $0x48] sm:$0xff]
  %v137 = vld [vmem:[%s3 + $0x50] sm:$0xff]
  %v138 = vld [vmem:[%s3 + $0x58] sm:$0xff]
  %v139 = vld [vmem:[%s3 + $0x60] sm:$0xff]
  %v140 = vld [vmem:[%s3 + $0x68] sm:$0xff]
  %v141 = vld [vmem:[%s3 + $0x70] sm:$0xff]
  %v142 = vld [vmem:[%s3 + $0x78] sm:$0xff]
  %v143 = vld [vmem:[%s3 + $0x80] sm:$0xff]
  %v144 = vld [vmem:[%s3 + $0x88] sm:$0xff]
  %v145 = vld [vmem:[%s3 + $0x90] sm:$0xff]
  %v146 = vld [vmem:[%s3 + $0x98] sm:$0xff]
  %v147 = vld [vmem:[%s3 + $0xa0] sm:$0xff]
  %v148 = vld [vmem:[%s3 + $0xa8] sm:$0xff]
  %v149 = vld [vmem:[%s3 + $0xb0] sm:$0xff]
  %v150 = vld [vmem:[%s3 + $0xb8] sm:$0xff]
  %v151 = vld [vmem:[%s3 + $0xc0] sm:$0xff]
  %v152 = vld [vmem:[%s3 + $0xc8] sm:$0xff]
  %v153 = vld [vmem:[%s3 + $0xd0] sm:$0xff]
  %v154 = vld [vmem:[%s3 + $0xd8] sm:$0xff]
  %v155 = vld [vmem:[%s3 + $0xe0] sm:$0xff]
  %v156 = vld [vmem:[%s3 + $0xe8] sm:$0xff]
  %v157 = vld [vmem:[%s3 + $0xf0] sm:$0xff]
  %v158 = vld [vmem:[%s3 + $0xf8] sm:$0xff]
  %v159 = vld [vmem:[%s4] sm:$0x3]
  %v161 = vlaneseq
  %v162 = vshrl.u32 %v161, 7
  %v163 = vsub.s32 0, %v162
  %v164 = vrot.slane %v159, %v163
  %v165 = vlaneseq
  %v166 = vshrl.u32 %v165, 7
  %v167 = vsub.s32 1, %v166
  %v168 = vrot.slane %v159, %v167
  %v203 = vunpack.c.l.b16 %v127
  %v204 = vunpack.c.h.b16 %v127
  %v205 = vunpack.c.l.b16 %v128
  %v206 = vunpack.c.h.b16 %v128
  %v207 = vunpack.c.l.b16 %v129
  %v208 = vunpack.c.h.b16 %v129
  %v209 = vunpack.c.l.b16 %v130
  %v210 = vunpack.c.h.b16 %v130
  %v211 = vunpack.c.l.b16 %v131
  %v212 = vunpack.c.h.b16 %v131
  %v213 = vunpack.c.l.b16 %v132
  %v214 = vunpack.c.h.b16 %v132
  %v215 = vunpack.c.l.b16 %v133
  %v216 = vunpack.c.h.b16 %v133
  %v217 = vunpack.c.l.b16 %v134
  %v218 = vunpack.c.h.b16 %v134
  %v219 = vunpack.c.l.b16 %v135
  %v220 = vunpack.c.h.b16 %v135
  %v221 = vunpack.c.l.b16 %v136
  %v222 = vunpack.c.h.b16 %v136
  %v223 = vunpack.c.l.b16 %v137
  %v224 = vunpack.c.h.b16 %v137
  %v225 = vunpack.c.l.b16 %v138
  %v226 = vunpack.c.h.b16 %v138
  %v227 = vunpack.c.l.b16 %v139
  %v228 = vunpack.c.h.b16 %v139
  %v229 = vunpack.c.l.b16 %v140
  %v230 = vunpack.c.h.b16 %v140
  %v231 = vunpack.c.l.b16 %v141
  %v232 = vunpack.c.h.b16 %v141
  %v233 = vunpack.c.l.b16 %v142
  %v234 = vunpack.c.h.b16 %v142
  %v235 = vunpack.c.l.b16 %v143
  %v236 = vunpack.c.h.b16 %v143
  %v237 = vunpack.c.l.b16 %v144
  %v238 = vunpack.c.h.b16 %v144
  %v239 = vunpack.c.l.b16 %v145
  %v240 = vunpack.c.h.b16 %v145
  %v241 = vunpack.c.l.b16 %v146
  %v242 = vunpack.c.h.b16 %v146
  %v243 = vunpack.c.l.b16 %v147
  %v244 = vunpack.c.h.b16 %v147
  %v245 = vunpack.c.l.b16 %v148
  %v246 = vunpack.c.h.b16 %v148
  %v247 = vunpack.c.l.b16 %v149
  %v248 = vunpack.c.h.b16 %v149
  %v249 = vunpack.c.l.b16 %v150
  %v250 = vunpack.c.h.b16 %v150
  %v251 = vunpack.c.l.b16 %v151
  %v252 = vunpack.c.h.b16 %v151
  %v253 = vunpack.c.l.b16 %v152
  %v254 = vunpack.c.h.b16 %v152
  %v255 = vunpack.c.l.b16 %v153
  %v256 = vunpack.c.h.b16 %v153
  %v257 = vunpack.c.l.b16 %v154
  %v258 = vunpack.c.h.b16 %v154
  %v259 = vunpack.c.l.b16 %v155
  %v260 = vunpack.c.h.b16 %v155
  %v261 = vunpack.c.l.b16 %v156
  %v262 = vunpack.c.h.b16 %v156
  %v263 = vunpack.c.l.b16 %v157
  %v264 = vunpack.c.h.b16 %v157
  %v265 = vunpack.c.l.b16 %v158
  %v266 = vunpack.c.h.b16 %v158
  %v267 = vpack.c.b16 %v205, %v203
  %v268 = vpack.c.b16 %v206, %v204
  %v269 = vpack.c.b16 %v209, %v207
  %v270 = vpack.c.b16 %v210, %v208
  %v271 = vpack.c.b16 %v213, %v211
  %v272 = vpack.c.b16 %v214, %v212
  %v273 = vpack.c.b16 %v217, %v215
  %v274 = vpack.c.b16 %v218, %v216
  %v275 = vpack.c.b16 %v221, %v219
  %v276 = vpack.c.b16 %v222, %v220
  %v277 = vpack.c.b16 %v225, %v223
  %v278 = vpack.c.b16 %v226, %v224
  %v279 = vpack.c.b16 %v229, %v227
  %v280 = vpack.c.b16 %v230, %v228
  %v281 = vpack.c.b16 %v233, %v231
  %v282 = vpack.c.b16 %v234, %v232
  %v283 = vpack.c.b16 %v237, %v235
  %v284 = vpack.c.b16 %v238, %v236
  %v285 = vpack.c.b16 %v241, %v239
  %v286 = vpack.c.b16 %v242, %v240
  %v287 = vpack.c.b16 %v245, %v243
  %v288 = vpack.c.b16 %v246, %v244
  %v289 = vpack.c.b16 %v249, %v247
  %v290 = vpack.c.b16 %v250, %v248
  %v291 = vpack.c.b16 %v253, %v251
  %v292 = vpack.c.b16 %v254, %v252
  %v293 = vpack.c.b16 %v257, %v255
  %v294 = vpack.c.b16 %v258, %v256
  %v295 = vpack.c.b16 %v261, %v259
  %v296 = vpack.c.b16 %v262, %v260
  %v297 = vpack.c.b16 %v265, %v263
  %v298 = vpack.c.b16 %v266, %v264
  %331 = vmatprep.subr.bf16.mxu0 %v268
  %332 = vmatpush1.bf16.msra.mxu0 %v267
  %333 = vmatprep.subr.bf16.mxu0 %v270
  %334 = vmatpush1.bf16.msra.mxu0 %v269
  %335 = vmatprep.subr.bf16.mxu0 %v272
  %336 = vmatpush1.bf16.msra.mxu0 %v271
  %337 = vmatprep.subr.bf16.mxu0 %v274
  %338 = vmatpush1.bf16.msra.mxu0 %v273
  %339 = vmatprep.subr.bf16.mxu0 %v276
  %340 = vmatpush1.bf16.msra.mxu0 %v275
  %341 = vmatprep.subr.bf16.mxu0 %v278
  %342 = vmatpush1.bf16.msra.mxu0 %v277
  %343 = vmatprep.subr.bf16.mxu0 %v280
  %344 = vmatpush1.bf16.msra.mxu0 %v279
  %345 = vmatprep.subr.bf16.mxu0 %v282
  %346 = vmatpush1.bf16.msra.mxu0 %v281
  %347 = vmatprep.subr.bf16.mxu0 %v284
  %348 = vmatpush1.bf16.msra.mxu0 %v283
  %349 = vmatprep.subr.bf16.mxu0 %v286
  %350 = vmatpush1.bf16.msra.mxu0 %v285
  %351 = vmatprep.subr.bf16.mxu0 %v288
  %352 = vmatpush1.bf16.msra.mxu0 %v287
  %353 = vmatprep.subr.bf16.mxu0 %v290
  %354 = vmatpush1.bf16.msra.mxu0 %v289
  %355 = vmatprep.subr.bf16.mxu0 %v292
  %356 = vmatpush1.bf16.msra.mxu0 %v291
  %357 = vmatprep.subr.bf16.mxu0 %v294
  %358 = vmatpush1.bf16.msra.mxu0 %v293
  %359 = vmatprep.subr.bf16.mxu0 %v296
  %360 = vmatpush1.bf16.msra.mxu0 %v295
  %361 = vmatprep.subr.bf16.mxu0 %v298
  %362 = vmatpush1.bf16.msra.mxu0 %v297
  %363 = vmatprep.mubr.bf16.mxu0 %v126
  %364 = vmatmul.mubr.bf16.gmra.mrb[0].mxu0 %v125
  %v365 = vpop.f32.mrb[0].mxu0
  %v366 = vadd.f32 %v164, %v365
  %v367 = vpop.f32.mrb[0].mxu0
  %v368 = vadd.f32 %v168, %v367
  %v369 = vpop.f32.mrb[0].mxu0
  %v370 = vpop.f32.mrb[0].mxu0
  %371 = vdwg.mxu0
  %v372 = vmax.f32 %v366, 0.0
  %v373 = vmax.f32 %v368, 0.0
  %v374 = vpack.c.bf16 %v372, %v372
  %v375 = vpack.c.bf16 %v373, %v373
  %v376 = vld [vmem:[%s5] sm:$0xf]
  %v377 = vld [vmem:[%s5 + $0x4] sm:$0xf]
  %v378 = vld [vmem:[%s5 + $0x8] sm:$0xf]
  %v379 = vld [vmem:[%s5 + $0xc] sm:$0xf]
  %v380 = vld [vmem:[%s5 + $0x10] sm:$0xf]
  %v381 = vld [vmem:[%s5 + $0x14] sm:$0xf]
  %v382 = vld [vmem:[%s5 + $0x18] sm:$0xf]
  %v383 = vld [vmem:[%s5 + $0x1c] sm:$0xf]
  %v384 = vld [vmem:[%s5 + $0x20] sm:$0xf]
  %v385 = vld [vmem:[%s5 + $0x24] sm:$0xf]
  %v386 = vld [vmem:[%s5 + $0x28] sm:$0xf]
  %v387 = vld [vmem:[%s5 + $0x2c] sm:$0xf]
  %v388 = vld [vmem:[%s5 + $0x30] sm:$0xf]
  %v389 = vld [vmem:[%s5 + $0x34] sm:$0xf]
  %v390 = vld [vmem:[%s5 + $0x38] sm:$0xf]
  %v391 = vld [vmem:[%s5 + $0x3c] sm:$0xf]
  %v392 = vld [vmem:[%s5 + $0x40] sm:$0xf]
  %v393 = vld [vmem:[%s5 + $0x44] sm:$0xf]
  %v394 = vld [vmem:[%s5 + $0x48] sm:$0xf]
  %v395 = vld [vmem:[%s5 + $0x4c] sm:$0xf]
  %v396 = vld [vmem:[%s5 + $0x50] sm:$0xf]
  %v397 = vld [vmem:[%s5 + $0x54] sm:$0xf]
  %v398 = vld [vmem:[%s5 + $0x58] sm:$0xf]
  %v399 = vld [vmem:[%s5 + $0x5c] sm:$0xf]
  %v400 = vld [vmem:[%s5 + $0x60] sm:$0xf]
  %v401 = vld [vmem:[%s5 + $0x64] sm:$0xf]
  %v402 = vld [vmem:[%s5 + $0x68] sm:$0xf]
  %v403 = vld [vmem:[%s5 + $0x6c] sm:$0xf]
  %v404 = vld [vmem:[%s5 + $0x70] sm:$0xf]
  %v405 = vld [vmem:[%s5 + $0x74] sm:$0xf]
  %v406 = vld [vmem:[%s5 + $0x78] sm:$0xf]
  %v407 = vld [vmem:[%s5 + $0x7c] sm:$0xf]
  %s408 = sld [smem:[#allocation2]]
  %v409 = vstv %s408
  %v442 = vunpack.c.l.b16 %v376
  %v443 = vunpack.c.l.b16 %v377
  %v444 = vunpack.c.l.b16 %v378
  %v445 = vunpack.c.l.b16 %v379
  %v446 = vunpack.c.l.b16 %v380
  %v447 = vunpack.c.l.b16 %v381
  %v448 = vunpack.c.l.b16 %v382
  %v449 = vunpack.c.l.b16 %v383
  %v450 = vunpack.c.l.b16 %v384
  %v451 = vunpack.c.l.b16 %v385
  %v452 = vunpack.c.l.b16 %v386
  %v453 = vunpack.c.l.b16 %v387
  %v454 = vunpack.c.l.b16 %v388
  %v455 = vunpack.c.l.b16 %v389
  %v456 = vunpack.c.l.b16 %v390
  %v457 = vunpack.c.l.b16 %v391
  %v458 = vunpack.c.l.b16 %v392
  %v459 = vunpack.c.l.b16 %v393
  %v460 = vunpack.c.l.b16 %v394
  %v461 = vunpack.c.l.b16 %v395
  %v462 = vunpack.c.l.b16 %v396
  %v463 = vunpack.c.l.b16 %v397
  %v464 = vunpack.c.l.b16 %v398
  %v465 = vunpack.c.l.b16 %v399
  %v466 = vunpack.c.l.b16 %v400
  %v467 = vunpack.c.l.b16 %v401
  %v468 = vunpack.c.l.b16 %v402
  %v469 = vunpack.c.l.b16 %v403
  %v470 = vunpack.c.l.b16 %v404
  %v471 = vunpack.c.l.b16 %v405
  %v472 = vunpack.c.l.b16 %v406
  %v473 = vunpack.c.l.b16 %v407
  %v474 = vpack.c.b16 %v443, %v442
  %v475 = vpack.c.b16 %v445, %v444
  %v476 = vpack.c.b16 %v447, %v446
  %v477 = vpack.c.b16 %v449, %v448
  %v478 = vpack.c.b16 %v451, %v450
  %v479 = vpack.c.b16 %v453, %v452
  %v480 = vpack.c.b16 %v455, %v454
  %v481 = vpack.c.b16 %v457, %v456
  %v482 = vpack.c.b16 %v459, %v458
  %v483 = vpack.c.b16 %v461, %v460
  %v484 = vpack.c.b16 %v463, %v462
  %v485 = vpack.c.b16 %v465, %v464
  %v486 = vpack.c.b16 %v467, %v466
  %v487 = vpack.c.b16 %v469, %v468
  %v488 = vpack.c.b16 %v471, %v470
  %v489 = vpack.c.b16 %v473, %v472
  %506 = vmatprep.subr.bf16.mxu0 0
  %507 = vmatpush1.bf16.msra.mxu0 %v474
  %508 = vmatprep.subr.bf16.mxu0 0
  %509 = vmatpush1.bf16.msra.mxu0 %v475
  %510 = vmatprep.subr.bf16.mxu0 0
  %511 = vmatpush1.bf16.msra.mxu0 %v476
  %512 = vmatprep.subr.bf16.mxu0 0
  %513 = vmatpush1.bf16.msra.mxu0 %v477
  %514 = vmatprep.subr.bf16.mxu0 0
  %515 = vmatpush1.bf16.msra.mxu0 %v478
  %516 = vmatprep.subr.bf16.mxu0 0
  %517 = vmatpush1.bf16.msra.mxu0 %v479
  %518 = vmatprep.subr.bf16.mxu0 0
  %519 = vmatpush1.bf16.msra.mxu0 %v480
  %520 = vmatprep.subr.bf16.mxu0 0
  %521 = vmatpush1.bf16.msra.mxu0 %v481
  %522 = vmatprep.subr.bf16.mxu0 0
  %523 = vmatpush1.bf16.msra.mxu0 %v482
  %524 = vmatprep.subr.bf16.mxu0 0
  %525 = vmatpush1.bf16.msra.mxu0 %v483
  %526 = vmatprep.subr.bf16.mxu0 0
  %527 = vmatpush1.bf16.msra.mxu0 %v484
  %528 = vmatprep.subr.bf16.mxu0 0
  %529 = vmatpush1.bf16.msra.mxu0 %v485
  %530 = vmatprep.subr.bf16.mxu0 0
  %531 = vmatpush1.bf16.msra.mxu0 %v486
  %532 = vmatprep.subr.bf16.mxu0 0
  %533 = vmatpush1.bf16.msra.mxu0 %v487
  %534 = vmatprep.subr.bf16.mxu0 0
  %535 = vmatpush1.bf16.msra.mxu0 %v488
  %536 = vmatprep.subr.bf16.mxu0 0
  %537 = vmatpush1.bf16.msra.mxu0 %v489
  %538 = vmatprep.mubr.bf16.mxu0 %v375
  %539 = vmatmul.mubr.bf16.gmra.mrb[0].mxu0 %v374
  %v540 = vpop.f32.mrb[0].mxu0
  %v541 = vadd.f32 %v409, %v540
  %v542 = vpop.f32.mrb[0].mxu0
  %v543 = vpop.f32.mrb[0].mxu0
  %v544 = vpop.f32.mrb[0].mxu0
  %545 = vdwg.mxu0
  %vm546 = vcmask 25600
  %547 = vst.msk [vmem:[%s7] sm:$0x3] %vm546, %v541
  // Predicated region
  $region30: #{mlp_forward.1} parent=0 // pred_check
    _
  $region31: #{mlp_forward.1} parent=0 // pred_check_branch
    %549 = sbr.rel (0) target = $region33
  $region32: #{mlp_forward.1} parent=0 // pred_region
    _
  $region33: #{mlp_forward.1} parent=0 // pred_fallthru
    _
  // Predicated region
  $region34: #{mlp_forward.1} parent=0 // pred_check
    _
  $region35: #{mlp_forward.1} parent=0 // pred_check_branch
    %551 = sbr.rel (0) target = $region37
  $region36: #{mlp_forward.1} parent=0 // pred_region
    _
  $region37: #{mlp_forward.1} parent=0 // pred_fallthru
    _

</llo_original>
